<compile_context>
chip_gen: v7x
topology: tpu7x:2x2x1
jax: 0.10.0
libtpu: 0.0.40
codegen_flags: <defaults>
</compile_context>

<pallas_src>
import jax
import jax.numpy as jnp
from jax.experimental import pallas as pl
from jax.experimental.pallas import tpu as pltpu


# --------------------------------------------------------------------------
# Kernels
# --------------------------------------------------------------------------
def _attention_kernel_single(x_ref, w_ref, out_ref, a_ref):
    """Whole sequence resident: x_ref (BB, L, E), w_ref (1, E),
    out_ref (BB, E), a_ref (BB, L)."""
    w = w_ref[...].astype(jnp.float32)                       # (1, E)
    x = x_ref[...].astype(jnp.float32)                       # (BB, L, E)

    # keepdims layout: L stays on sublanes end-to-end (no vxpose of the big
    # tensor between the softmax and the weighted sum).
    s = jnp.tanh(jnp.sum(x * w, axis=-1, keepdims=True))     # (BB, L, 1)
    m = jnp.max(s, axis=1, keepdims=True)                    # (BB, 1, 1)
    e = jnp.exp(s - m)                                        # (BB, L, 1)
    d = jnp.sum(e, axis=1, keepdims=True)                     # (BB, 1, 1)
    inv = pl.reciprocal(d, approx=True)                       # EUP slot (free)
    inv = inv * (2.0 - d * inv)                               # Newton step -> ~f32 exact
    a = e * inv                                               # (BB, L, 1)

    # Re-read the tile from VMEM (3 vld slots, never the binding slot) instead
    # of keeping a multi-MiB temporary live across the softmax.
    out = jnp.sum(x_ref[...].astype(jnp.float32) * a, axis=1)  # (BB, E)

    out_ref[...] = out.astype(out_ref.dtype)
    a_ref[...] = a[:, :, 0].astype(a_ref.dtype)               # small relayout only


def _attention_kernel_ltiled(x_ref, w_ref, out_ref, a_ref,
                             m_scr, d_scr, acc_scr, a_scr):
    """Online-softmax over an L grid axis ("arbitrary").
    x_ref (BB, TL, E); out_ref (BB, E), a_ref (BB, L) resident across L steps;
    scratch: m_scr/d_scr (BB, 1), acc_scr (BB, E), a_scr (BB, L), all f32."""
    l = pl.program_id(1)
    n_l = pl.num_programs(1)
    TL = x_ref.shape[1]

    @pl.when(l == 0)
    def _init():
        m_scr[...] = jnp.full_like(m_scr, -jnp.inf)
        d_scr[...] = jnp.zeros_like(d_scr)
        acc_scr[...] = jnp.zeros_like(acc_scr)
        a_scr[...] = jnp.zeros_like(a_scr)

    w = w_ref[...].astype(jnp.float32)                        # (1, E)
    x = x_ref[...].astype(jnp.float32)                        # (BB, TL, E)

    s = jnp.tanh(jnp.sum(x * w, axis=-1, keepdims=True))      # (BB, TL, 1)

    m_prev = m_scr[...]                                        # (BB, 1)
    m_new = jnp.maximum(m_prev, jnp.max(s, axis=1))            # (BB, 1)
    alpha = jnp.exp(m_prev - m_new)                            # (BB, 1) (== 0 on step 0)
    e = jnp.exp(s - m_new[:, :, None])                         # (BB, TL, 1)

    d_scr[...] = alpha * d_scr[...] + jnp.sum(e, axis=1)
    acc_scr[...] = alpha * acc_scr[...] + jnp.sum(
        x_ref[...].astype(jnp.float32) * e, axis=1)            # (BB, E)
    m_scr[...] = m_new

    # Unnormalized weights: rescale what was written so far, append this block.
    # TODO(synk): the dynamic lane-offset store is cheapest when TL % 128 == 0.
    a_scr[...] = a_scr[...] * alpha
    start = pl.multiple_of(l * TL, TL)
    a_scr[:, pl.ds(start, TL)] = e[:, :, 0]

    @pl.when(l == n_l - 1)
    def _finalize():
        d = d_scr[...]
        inv = pl.reciprocal(d, approx=True)
        inv = inv * (2.0 - d * inv)
        out_ref[...] = (acc_scr[...] * inv).astype(out_ref.dtype)
        a_ref[...] = (a_scr[...] * inv).astype(a_ref.dtype)


# --------------------------------------------------------------------------
# Tiling / budgeting
# --------------------------------------------------------------------------
def _vmem_capacity_bytes():
    """Physical per-core VMEM; conservative fallback (v7x) if unqueryable."""
    try:
        info = pltpu.get_tpu_info()
        cap = int(getattr(info, "vmem_capacity_bytes", 0) or 0)
        if cap > 0:
            return cap
    except Exception:
        pass
    return 64 * 1024 * 1024


def _choose_tiling(B, L, E, itemsize, budget_bytes):
    """Pick (BB, TL, B_pad): batch rows / sequence rows per block, padded batch."""

    def footprint(bb, tl):
        return (2 * bb * tl * E * itemsize            # x, double-buffered
                + 2 * bb * (E + L) * itemsize         # out + a_, double-buffered
                + 4 * bb * (E + L + 16)               # f32 accumulator scratch
                + 2 * E * itemsize                    # weight row
                + (2 << 20))                          # compiler-scratch headroom

    bb_min = B if B <= 8 else 8

    # Sequence block: full L if it fits, else the largest multiple-of-8 divisor
    # of L that does (layout rule on the x block's sublane dim).
    TL = L
    if footprint(bb_min, L) > budget_bytes and L >= 16:
        tl = (L // 8) * 8
        found = None
        while tl >= 8:
            if L % tl == 0:
                found = tl
                if footprint(bb_min, tl) <= budget_bytes:
                    break
            tl -= 8
        if found is not None:
            TL = found
        # TODO(synk): if L has no small enough multiple-of-8 divisor we fall
        # back to the smallest one found (best effort; may exceed the budget).

    # Batch block: whole batch for tiny B, otherwise the largest multiple of 8
    # that fits; prefer >= 4 pipeline steps while tiles stay >= ~512 KiB.
    if B <= 8:
        BB = B
    else:
        BB = 8
        cand = 16
        b_ceil = ((B + 7) // 8) * 8
        while cand <= b_ceil:
            if footprint(cand, TL) <= budget_bytes:
                BB = cand
            else:
                break
            cand += 8
        while (BB > 8 and -(-B // BB) < 4
               and (BB - 8) * TL * E * itemsize >= (512 << 10)):
            BB -= 8

    n_b = -(-B // BB)
    if n_b > 1 and n_b % 2 == 1:
        # Even per-core split on 2-TensorCore chips; never increases the
        # per-core block count, only fills the otherwise idle core.
        n_b += 1
    B_pad = n_b * BB
    return BB, TL, B_pad


# --------------------------------------------------------------------------
# Wrapper
# --------------------------------------------------------------------------
def attention_forward(x, weight, block_batch=None, block_len=None):
    """x: (B, L, E), weight: (E, 1) -> (output (B, E), a_ (B, L))."""
    B, L, E = x.shape
    itemsize = x.dtype.itemsize

    vmem_cap = _vmem_capacity_bytes()
    vmem_limit = max(16 << 20, int(vmem_cap * 0.7))

    BB, TL, B_pad = _choose_tiling(B, L, E, itemsize, vmem_limit)
    if block_batch is not None:
        BB = block_batch
        B_pad = -(-B // BB) * BB
    if block_len is not None:
        assert L % block_len == 0, "block_len must divide max_len"
        TL = block_len

    x_in = x if B_pad == B else jnp.pad(x, ((0, B_pad - B), (0, 0), (0, 0)))
    w_row = weight.reshape(1, E)

    n_b = B_pad // BB
    n_l = L // TL

    cost = pl.CostEstimate(
        flops=int(4 * B_pad * L * E),
        transcendentals=int(2 * B_pad * L),
        bytes_accessed=int(itemsize * (B_pad * L * E + B_pad * L + B_pad * E + E)),
    )
    out_shape = (jax.ShapeDtypeStruct((B_pad, E), x.dtype),
                 jax.ShapeDtypeStruct((B_pad, L), x.dtype))

    if n_l == 1:
        # Common case: full sequence resident per step, 1-D batch grid.
        grid_spec = pltpu.PrefetchScalarGridSpec(
            num_scalar_prefetch=0,
            grid=(n_b,),
            in_specs=[
                pl.BlockSpec((BB, L, E), lambda b: (b, 0, 0)),
                pl.BlockSpec((1, E), lambda b: (0, 0)),
            ],
            out_specs=[
                pl.BlockSpec((BB, E), lambda b: (b, 0)),
                pl.BlockSpec((BB, L), lambda b: (b, 0)),
            ],
        )
        kernel = _attention_kernel_single
        dims = ("parallel",)
    else:
        # Long-sequence path: L tiled with online-softmax accumulators.
        grid_spec = pltpu.PrefetchScalarGridSpec(
            num_scalar_prefetch=0,
            grid=(n_b, n_l),
            in_specs=[
                pl.BlockSpec((BB, TL, E), lambda b, l: (b, l, 0)),
                pl.BlockSpec((1, E), lambda b, l: (0, 0)),
            ],
            out_specs=[
                pl.BlockSpec((BB, E), lambda b, l: (b, 0)),
                pl.BlockSpec((BB, L), lambda b, l: (b, 0)),
            ],
            scratch_shapes=[
                pltpu.VMEM((BB, 1), jnp.float32),
                pltpu.VMEM((BB, 1), jnp.float32),
                pltpu.VMEM((BB, E), jnp.float32),
                pltpu.VMEM((BB, L), jnp.float32),
            ],
        )
        kernel = _attention_kernel_ltiled
        dims = ("parallel", "arbitrary")

    out, a_ = pl.pallas_call(
        kernel,
        out_shape=out_shape,
        grid_spec=grid_spec,
        compiler_params=pltpu.CompilerParams(
            dimension_semantics=dims,
            vmem_limit_bytes=vmem_limit,
        ),
        cost_estimate=cost,
    )(x_in, w_row)

    if B_pad != B:
        out = out[:B]
        a_ = a_[:B]
    return out, a_


def reference_forward(x, weight):
    # Pure-JAX reference mirroring the PyTorch forward (mask=None path).
    scores = jnp.tanh(jnp.einsum("ble,eo->blo", x, weight))   # (B, L, 1)
    a_ = jax.nn.softmax(scores[..., 0], axis=-1)              # (B, L)
    output = jnp.sum(x * a_[..., None], axis=1)               # (B, E)
    return output, a_


if __name__ == "__main__":
    # Small shapes consistent with the module: input_shape = (batch, max_len, emb_size)
    B, L, E = 2, 8, 32

    key = jax.random.PRNGKey(0)
    kx, kw, kb = jax.random.split(key, 3)

    x = jax.random.normal(kx, (B, L, E), dtype=jnp.float32)
    # weight (E, 1): kaiming_uniform_(a=sqrt(5)) on a 2-D (E, 1) tensor -> U(-1, 1)
    weight = jax.random.uniform(kw, (E, 1), dtype=jnp.float32, minval=-1.0, maxval=1.0)
    # bias (L, 1): U(-1/sqrt(fan_in), 1/sqrt(fan_in)) with fan_in = 1 -> U(-1, 1)
    bias = jax.random.uniform(kb, (L, 1), dtype=jnp.float32, minval=-1.0, maxval=1.0)
    # (bias is unused in the forward pass of the reference module)

    out, a_ = attention_forward(x, weight)
    out = jax.block_until_ready(out)
    a_ = jax.block_until_ready(a_)

    ref_out, ref_a = reference_forward(x, weight)
    assert jnp.allclose(out, ref_out, atol=1e-5, rtol=1e-5), "output mismatch"
    assert jnp.allclose(a_, ref_a, atol=1e-5, rtol=1e-5), "attention weights mismatch"

    print("KERNEL_OK")
</pallas_src>

<mosaic_0001>
module attributes {stable_mosaic.version = 11 : i64} {
  func.func @_attention_kernel_single(%arg0: i32, %arg1: memref<2x8x32xf32, #tpu.memory_space<vmem>>, %arg2: memref<1x32xf32, #tpu.memory_space<vmem>>, %arg3: memref<2x32xf32, #tpu.memory_space<vmem>>, %arg4: memref<2x8xf32, #tpu.memory_space<vmem>>) attributes {dimension_semantics = [#tpu.dimension_semantics<parallel>], iteration_bounds = array<i64: 1>, scalar_prefetch = 0 : i64, scratch_operands = 0 : i64, tpu.core_type = #tpu.core_type<tc>, window_params = [{transform_indices = @transform_0, window_bounds = array<i64: 2, 8, 32>}, {pipeline_mode = #tpu.pipeline_mode<synchronous>, transform_indices = @transform_1, window_bounds = array<i64: 1, 32>}, {transform_indices = @transform_2, window_bounds = array<i64: 2, 32>}, {transform_indices = @transform_3, window_bounds = array<i64: 2, 8>}]} {
    %c0 = arith.constant 0 : index
    %c0_0 = arith.constant 0 : index
    %0 = vector.load %arg2[%c0, %c0_0] : memref<1x32xf32, #tpu.memory_space<vmem>>, vector<1x32xf32>
    %c0_1 = arith.constant 0 : index
    %c0_2 = arith.constant 0 : index
    %c0_3 = arith.constant 0 : index
    %1 = vector.load %arg1[%c0_1, %c0_2, %c0_3] : memref<2x8x32xf32, #tpu.memory_space<vmem>>, vector<2x8x32xf32>
    %2 = vector.shape_cast %0 : vector<1x32xf32> to vector<1x1x32xf32>
    %3 = vector.broadcast %2 : vector<1x1x32xf32> to vector<2x8x32xf32>
    %4 = arith.mulf %1, %3 : vector<2x8x32xf32>
    %cst = arith.constant dense<0.000000e+00> : vector<2x8xf32>
    %5 = vector.multi_reduction <add>, %4, %cst [2] : vector<2x8x32xf32> to vector<2x8xf32>
    %6 = vector.shape_cast %5 : vector<2x8xf32> to vector<2x8x1xf32>
    %7 = math.tanh %6 : vector<2x8x1xf32>
    %cst_4 = arith.constant dense<0xFF800000> : vector<2x1xf32>
    %8 = vector.multi_reduction <maximumf>, %7, %cst_4 [1] : vector<2x8x1xf32> to vector<2x1xf32>
    %9 = vector.shape_cast %8 : vector<2x1xf32> to vector<2x1x1xf32>
    %10 = vector.broadcast %9 : vector<2x1x1xf32> to vector<2x8x1xf32>
    %11 = arith.subf %7, %10 : vector<2x8x1xf32>
    %12 = math.exp %11 : vector<2x8x1xf32>
    %cst_5 = arith.constant dense<0.000000e+00> : vector<2x1xf32>
    %13 = vector.multi_reduction <add>, %12, %cst_5 [1] : vector<2x8x1xf32> to vector<2x1xf32>
    %14 = vector.shape_cast %13 : vector<2x1xf32> to vector<2x1x1xf32>
    %15 = tpu.reciprocal %14 {approx = true} : vector<2x1x1xf32> -> vector<2x1x1xf32>
    %16 = arith.mulf %14, %15 : vector<2x1x1xf32>
    %cst_6 = arith.constant 2.000000e+00 : f32
    %17 = vector.broadcast %cst_6 : f32 to vector<2x1x1xf32>
    %18 = arith.subf %17, %16 : vector<2x1x1xf32>
    %19 = arith.mulf %15, %18 : vector<2x1x1xf32>
    %20 = vector.broadcast %19 : vector<2x1x1xf32> to vector<2x8x1xf32>
    %21 = arith.mulf %12, %20 : vector<2x8x1xf32>
    %c0_7 = arith.constant 0 : index
    %c0_8 = arith.constant 0 : index
    %c0_9 = arith.constant 0 : index
    %22 = vector.load %arg1[%c0_7, %c0_8, %c0_9] : memref<2x8x32xf32, #tpu.memory_space<vmem>>, vector<2x8x32xf32>
    %23 = vector.broadcast %21 : vector<2x8x1xf32> to vector<2x8x32xf32>
    %24 = arith.mulf %22, %23 : vector<2x8x32xf32>
    %cst_10 = arith.constant dense<0.000000e+00> : vector<2x32xf32>
    %25 = vector.multi_reduction <add>, %24, %cst_10 [1] : vector<2x8x32xf32> to vector<2x32xf32>
    %c0_11 = arith.constant 0 : index
    %c0_12 = arith.constant 0 : index
    %26 = vector.load %arg3[%c0_11, %c0_12] : memref<2x32xf32, #tpu.memory_space<vmem>>, vector<2x32xf32>
    tpu.vector_store %arg3[%c0_11, %c0_12], %25 {strides = array<i32>} : memref<2x32xf32, #tpu.memory_space<vmem>>, vector<2x32xf32>,
    %27 = vector.shape_cast %21 : vector<2x8x1xf32> to vector<2x8xf32>
    %c0_13 = arith.constant 0 : index
    %c0_14 = arith.constant 0 : index
    %28 = vector.load %arg4[%c0_13, %c0_14] : memref<2x8xf32, #tpu.memory_space<vmem>>, vector<2x8xf32>
    tpu.vector_store %arg4[%c0_13, %c0_14], %27 {strides = array<i32>} : memref<2x8xf32, #tpu.memory_space<vmem>>, vector<2x8xf32>,
    return
  }
  func.func @transform_0(%arg0: i32) -> (i32, i32, i32) {
    %c0_i32 = arith.constant 0 : i32
    %c0_i32_0 = arith.constant 0 : i32
    %c0_i32_1 = arith.constant 0 : i32
    return %arg0, %c0_i32, %c0_i32_0 : i32, i32, i32
  }
  func.func @transform_1(%arg0: i32) -> (i32, i32) {
    %c0_i32 = arith.constant 0 : i32
    %c0_i32_0 = arith.constant 0 : i32
    %c0_i32_1 = arith.constant 0 : i32
    return %c0_i32, %c0_i32_0 : i32, i32
  }
  func.func @transform_2(%arg0: i32) -> (i32, i32) {
    %c0_i32 = arith.constant 0 : i32
    %c0_i32_0 = arith.constant 0 : i32
    return %arg0, %c0_i32 : i32, i32
  }
  func.func @transform_3(%arg0: i32) -> (i32, i32) {
    %c0_i32 = arith.constant 0 : i32
    %c0_i32_0 = arith.constant 0 : i32
    return %arg0, %c0_i32 : i32, i32
  }
}

</mosaic_0001>

<llo_original>
// kernel: tpu_custom_call.1
$region0: #{tpu_custom_call.1}
  #allocation0 [shape = 'u32[]', space=smem, size = 0x4, offset = 0x4, fixed_abs, tag = 'smem constant byte address 0x4 - core index']
  #allocation1 [shape = 'u32[144,128]{1,0:T(1,128)}', space=vmem, size = 0x12000, scoped, tag = 'internal scratch']
  %s0 = inlined_call_operand.hbm [shape: f32[2,8,32], index: 0, kind: input, shape index: {}]
  %s1 = inlined_call_operand.vmem [shape: f32[1,32], index: 1, kind: input, shape index: {}]
  %s2 = inlined_call_operand.hbm [shape: f32[2,32], index: 2, kind: output, shape index: {0}]
  %s3 = inlined_call_operand.hbm [shape: f32[2,8], index: 3, kind: output, shape index: {1}]
  %4 = xla_tuple %s2, %s3
  %s5 = sld [smem:[#allocation0]]
  $region30: #{tpu_custom_call.1} parent=0
    _
  %s7 = ssub.s32 1, %s5
  %s8 = scalar_select 0, %s7, %s5
  $region1: #{tpu_custom_call.1} parent=0
    #allocation2 [shape = 'u8[8192]{0}', space=vmem, size = 0x2000, scoped, tag = 'input window, operand 0, single buffered']
    #allocation3 [shape = 's32[1]{0}', space=sflag, size = 0x4, scoped, tag = 'scoped memory for tpu_custom_call.1']
    #allocation4 [shape = 's32[1]{0}', space=sflag, size = 0x4, scoped, tag = 'scoped memory for tpu_custom_call.1']
    #allocation5 [shape = 'u8[1024]{0}', space=vmem, size = 0x400, scoped, tag = 'output window, operand 0, single buffered']
    #allocation6 [shape = 'u8[1024]{0}', space=vmem, size = 0x400, scoped, tag = 'output window, operand 1, single buffered']
    #allocation7 [shape = 's32[1]{0}', space=sflag, size = 0x4, scoped, tag = 'scoped memory for tpu_custom_call.1']
    %9 = vsyncpa [#allocation3], 0
    %10 = vsyncpa [#allocation4], 0
    %11 = vsyncpa [#allocation7], 0
    // Predicated region
    $region2: #{tpu_custom_call.1} parent=1 // pred_check
      _
    $region3: #{tpu_custom_call.1} parent=1 // pred_check_branch
      %13 = sbr.rel (0) target = $region5
    $region4: #{tpu_custom_call.1} parent=1 // pred_region
      %s15 = ssub.s32 256, 256
      %16 = vsyncadd [#allocation3], %s15
      %s17 = sshll.u32 [#allocation2], 4
      %s18 = int_to_ptr.vmem [resolvable:$true] %s17
      %23 = dma.hbm_to_vmem [thread:$0]  %s0, 256, %s18, [#allocation3], 128, 128, 8
    $region5: #{tpu_custom_call.1} parent=1 // pred_fallthru
      _
    // Predicated region
    $region6: #{tpu_custom_call.1} parent=1 // pred_check
      _
    $region7: #{tpu_custom_call.1} parent=1 // pred_check_branch
      %25 = sbr.rel (0) target = $region9
    $region8: #{tpu_custom_call.1} parent=1 // pred_region
      _
    $region9: #{tpu_custom_call.1} parent=1 // pred_fallthru
      _
    // Predicated region
    $region10: #{tpu_custom_call.1} parent=1 // pred_check
      _
    $region11: #{tpu_custom_call.1} parent=1 // pred_check_branch
      %27 = sbr.rel (0) target = $region13
    $region12: #{tpu_custom_call.1} parent=1 // pred_region
      %28 = dma.done [#allocation3], 256
    $region13: #{tpu_custom_call.1} parent=1 // pred_fallthru
      _
    %v29 = vld [vmem:[%s1] sm:$0x1]
    %v30 = vld [vmem:[#allocation2] sm:$0xff]
    %v31 = vld [vmem:[#allocation2 + $0x8] sm:$0xff]
    %v33 = vlaneseq
    %v34 = vshrl.u32 %v33, 7
    %v35 = vsub.s32 0, %v34
    %v36 = vrot.slane %v29, %v35
    %v38 = vmul.f32 %v30, %v36
    %v39 = vmul.f32 %v31, %v36
    %vm40 = vcmask 261120
    %v41 = vsel %vm40, %v38, 0.0
    %42 = vadd.xlane.f32.xlu0 %v41
    %v43 = vpop.xlane.xlu0 %42
    %v44 = vsel %vm40, %v39, 0.0
    %45 = vadd.xlane.f32.xlu0 %v44
    %v46 = vpop.xlane.xlu0 %45
    %v47 = vtanh.pop %v43
    %v48 = vtanh.pop %v46
    %v49 = vrot.slane %v47, 4
    %v50 = vmax.f32 %v47, %v49
    %v51 = vrot.slane %v50, 2
    %v52 = vmax.f32 %v50, %v51
    %v53 = vrot.slane %v52, 1
    %v54 = vmax.f32 %v52, %v53
    %v55 = vrot.slane %v48, 4
    %v56 = vmax.f32 %v48, %v55
    %v57 = vrot.slane %v56, 2
    %v58 = vmax.f32 %v56, %v57
    %v59 = vrot.slane %v58, 1
    %v60 = vmax.f32 %v58, %v59
    %v61 = vsub.f32 %v47, %v54
    %v62 = vsub.f32 %v48, %v60
    %v63 = vmul.f32 %v61, 1.442695
    %v64 = vpow.pop %v63
    %v65 = vmul.f32 %v62, 1.442695
    %v66 = vpow.pop %v65
    %v67 = vrot.slane %v64, 4
    %v68 = vadd.f32 %v64, %v67
    %v69 = vrot.slane %v68, 2
    %v70 = vadd.f32 %v68, %v69
    %v71 = vrot.slane %v70, 1
    %v72 = vadd.f32 %v70, %v71
    %v73 = vrot.slane %v66, 4
    %v74 = vadd.f32 %v66, %v73
    %v75 = vrot.slane %v74, 2
    %v76 = vadd.f32 %v74, %v75
    %v77 = vrot.slane %v76, 1
    %v78 = vadd.f32 %v76, %v77
    %v79 = vrcp.pop %v72
    %v80 = vrcp.pop %v78
    %v81 = vmul.f32 %v72, %v79
    %v82 = vmul.f32 %v78, %v80
    %v83 = vsub.f32 2.0, %v81
    %v84 = vsub.f32 2.0, %v82
    %v85 = vmul.f32 %v79, %v83
    %v86 = vmul.f32 %v80, %v84
    %v87 = vmul.f32 %v64, %v85
    %v88 = vmul.f32 %v66, %v86
    %v89 = vmul.f32 %v30, %v87
    %v90 = vmul.f32 %v31, %v88
    %v91 = vsel %vm40, %v89, 0.0
    %v92 = vrot.slane %v91, 4
    %v93 = vadd.f32 %v91, %v92
    %v94 = vrot.slane %v93, 2
    %v95 = vadd.f32 %v93, %v94
    %v96 = vrot.slane %v95, 1
    %v97 = vadd.f32 %v95, %v96
    %v98 = vsel %vm40, %v90, 0.0
    %v99 = vrot.slane %v98, 4
    %v100 = vadd.f32 %v98, %v99
    %v101 = vrot.slane %v100, 2
    %v102 = vadd.f32 %v100, %v101
    %v103 = vrot.slane %v102, 1
    %v104 = vadd.f32 %v102, %v103
    %vm107 = vcmask 1041409
    %v108 = vsel %vm107, %v104, %v97
    %vm110 = vcmask 254976
    %111 = vst.msk [vmem:[#allocation5] sm:$0x3] %vm110, %v108
    %v114 = vlaneseq
    %v115 = vand.u32 %v114, 127
    %v116 = vlaneseq
    %v117 = vshrl.u32 %v116, 7
    %v118 = vsub.s32 %v115, %v117
    %v119 = vrot.slane %v87, %v118
    %v120 = vlaneseq
    %v121 = vshrl.u32 %v120, 7
    %v122 = vsub.s32 %v115, %v121
    %v123 = vrot.slane %v88, %v122
    %v124 = vsel %vm107, %v123, %v119
    %vm126 = vcmask 58368
    %127 = vst.msk [vmem:[#allocation6] sm:$0x3] %vm126, %v124
    // Predicated region
    $region14: #{tpu_custom_call.1} parent=1 // pred_check
      _
    $region15: #{tpu_custom_call.1} parent=1 // pred_check_branch
      %129 = sbr.rel (0) target = $region17
    $region16: #{tpu_custom_call.1} parent=1 // pred_region
      %s131 = ssub.s32 32, 32
      %132 = vsyncadd [#allocation4], %s131
      %s134 = sshll.u32 [#allocation5], 4
      %s135 = int_to_ptr.vmem [resolvable:$true] %s134
      %137 = dma.vmem_to_hbm [thread:$0]  %s135, 32, %s2, [#allocation4]
    $region17: #{tpu_custom_call.1} parent=1 // pred_fallthru
      _
    // Predicated region
    $region18: #{tpu_custom_call.1} parent=1 // pred_check
      _
    $region19: #{tpu_custom_call.1} parent=1 // pred_check_branch
      %139 = sbr.rel (0) target = $region21
    $region20: #{tpu_custom_call.1} parent=1 // pred_region
      %s141 = ssub.s32 32, 32
      %142 = vsyncadd [#allocation7], %s141
      %s144 = sshll.u32 [#allocation6], 4
      %s145 = int_to_ptr.vmem [resolvable:$true] %s144
      %147 = dma.vmem_to_hbm [thread:$0]  %s145, 32, %s3, [#allocation7]
    $region21: #{tpu_custom_call.1} parent=1 // pred_fallthru
      _
    // Predicated region
    $region22: #{tpu_custom_call.1} parent=1 // pred_check
      _
    $region23: #{tpu_custom_call.1} parent=1 // pred_check_branch
      %149 = sbr.rel (0) target = $region25
    $region24: #{tpu_custom_call.1} parent=1 // pred_region
      %150 = dma.done [#allocation4], 32
    $region25: #{tpu_custom_call.1} parent=1 // pred_fallthru
      _
    // Predicated region
    $region26: #{tpu_custom_call.1} parent=1 // pred_check
      _
    $region27: #{tpu_custom_call.1} parent=1 // pred_check_branch
      %152 = sbr.rel (0) target = $region29
    $region28: #{tpu_custom_call.1} parent=1 // pred_region
      %153 = dma.done [#allocation7], 32
    $region29: #{tpu_custom_call.1} parent=1 // pred_fallthru
      _
    %154 = vsyncpa [#allocation3], 1
    %155 = vsyncpa [#allocation4], 1
    %156 = vsyncpa [#allocation7], 1

</llo_original>
